<compile_context>
chip_gen: v6e
topology: v6e:2x2x1
jax: 0.10.0
libtpu: 0.0.40
codegen_flags: <defaults>
</compile_context>

<pallas_src>
import functools
import math

import jax
import jax.numpy as jnp
from jax import lax
from jax.experimental import pallas as pl
from jax.experimental.pallas import tpu as pltpu

LN_EPS = 1e-5          # torch.nn.LayerNorm default
NEG_INF = -1e30        # f32 mask fill (scores are always f32)
HIGH = lax.Precision.HIGHEST


def _layernorm(x, g, b):
    mu = jnp.mean(x, axis=-1, keepdims=True)
    var = jnp.mean(jnp.square(x - mu), axis=-1, keepdims=True)
    return (x - mu) * lax.rsqrt(var + LN_EPS) * g + b


def _gelu_exact(x):
    # torch.nn.GELU default is the exact (erf) formulation
    return 0.5 * x * (1.0 + lax.erf(x * 0.7071067811865476))


# ----------------------------------------------------------------------------
# Generation-aware VMEM budget / block selection
# ----------------------------------------------------------------------------
def _vmem_limit_bytes():
    cap = None
    try:
        info = pltpu.get_tpu_info()
        cap = getattr(info, "vmem_capacity_bytes", None)
    except Exception:
        cap = None
    if not cap or cap <= 0:
        cap = 64 * 1024 * 1024       # conservative fallback (v7x-sized)
    # leave headroom for compiler-internal scratch / pipeline buffers
    return int(max(32 * 1024 * 1024, cap - 16 * 1024 * 1024))


def _candidate_blocks(S):
    cands = [b for b in (512, 256, 128, 64, 32, 16, 8) if S % b == 0]
    return cands if cands else [S]


def _pick_attn_block(S, D, L, heads, itemsize, vmem_limit):
    dh = D // heads
    cands = _candidate_blocks(S)
    for blk in cands:
        io = 2 * blk * (2 * D + L) * itemsize                       # x, h1, c tiles (double buffered)
        w = 2 * (2 * D * D + 2 * L * D + 5 * D) * itemsize          # resident attn weights
        scr = blk * D * itemsize + heads * blk * (dh + 2) * 4       # q scratch + f32 stats/acc
        if io + w + scr <= 0.7 * vmem_limit:
            return blk
    return cands[-1]


def _pick_ffn_block(S, D, inner, L, itemsize, vmem_limit):
    cands = _candidate_blocks(S)
    for blk in cands:
        io = 2 * blk * (2 * D + L) * itemsize
        w = 2 * (2 * D * inner + D * L + inner + 8 * D) * itemsize
        tmp = blk * inner * 4 + blk * D * 4                          # f32 intermediates
        if io + w + tmp <= 0.7 * vmem_limit:
            return blk
    return cands[-1]


# ----------------------------------------------------------------------------
# Pallas kernels
# ----------------------------------------------------------------------------
def kv_compress_kernel(x_ref, wdkv_ref, c_ref):
    """c_kv = x @ W_dkv (the MLA latent / kv cache) for layer 0, row-tiled."""
    c = jnp.dot(x_ref[0], wdkv_ref[...], preferred_element_type=jnp.float32)
    c_ref[0] = c.astype(c_ref.dtype)


def attention_kernel(
    # scalar prefetch (SMEM): per-step (q_tile, kv_tile) lookup tables
    qt_ref, kt_ref,
    # inputs
    x_ref, c_ref, wq_ref, wuk_ref, wuv_ref, wo_ref, bo_ref, g1_ref, be1_ref,
    # output
    h1_ref,
    # scratch
    q_scr, m_scr, l_scr, acc_scr,
    *, heads, dim_head, block_q, block_k, compute_dtype, approx_recip):
    step = pl.program_id(1)
    qi = qt_ref[step]
    ki = kt_ref[step]

    @pl.when(ki == 0)          # first kv tile of a q row: init stats + q projection
    def _init():
        m_scr[...] = jnp.full_like(m_scr, NEG_INF)
        l_scr[...] = jnp.zeros_like(l_scr)
        acc_scr[...] = jnp.zeros_like(acc_scr)
        # 1/sqrt(dim_head) is pre-folded into wq at prepare_params time
        q = jnp.dot(x_ref[0], wq_ref[...], preferred_element_type=jnp.float32)
        q_scr[...] = q.astype(compute_dtype)

    def _attend(masked):
        # decompress latent kv tile -> K, V of shape (block_k, D)
        c = c_ref[0]
        k = jnp.dot(c, wuk_ref[...], preferred_element_type=jnp.float32).astype(compute_dtype)
        v = jnp.dot(c, wuv_ref[...], preferred_element_type=jnp.float32).astype(compute_dtype)
        if masked:
            # diagonal tile (block_q == block_k): local lower-triangular mask
            row = lax.broadcasted_iota(jnp.int32, (block_q, block_k), 0)
            col = lax.broadcasted_iota(jnp.int32, (block_q, block_k), 1)
            visible = col <= row
        # TODO(synk): per-head slices are dh-wide (often sub-128-lane); 128-lane
        # aligned head slabs / MLA weight absorption would remove the relayouts.
        for h in range(heads):
            sl = slice(h * dim_head, (h + 1) * dim_head)
            s = lax.dot_general(q_scr[:, sl], k[:, sl], (((1,), (1,)), ((), ())),
                                preferred_element_type=jnp.float32)      # (tq, tk) f32
            if masked:
                s = jnp.where(visible, s, NEG_INF)
            m_prev = m_scr[h]
            m_new = jnp.maximum(m_prev, jnp.max(s, axis=-1, keepdims=True))
            alpha = jnp.exp(m_prev - m_new)
            p = jnp.exp(s - m_new)
            l_scr[h] = alpha * l_scr[h] + jnp.sum(p, axis=-1, keepdims=True)
            acc_scr[h] = alpha * acc_scr[h] + jnp.dot(
                p.astype(compute_dtype), v[:, sl], preferred_element_type=jnp.float32)
            m_scr[h] = m_new

    @pl.when(ki < qi)          # fully-visible tile: no mask, no iota, no wasted exp
    def _off_diag():
        _attend(masked=False)

    @pl.when(ki == qi)         # diagonal tile: causal mask
    def _diag():
        _attend(masked=True)

    # epilogue: last kv tile of this q row -> out-proj + residual + LN1
    @pl.when(ki == qi)
    def _epilogue():
        # normalize per-head outputs into one (block_q, D) buffer (q is dead here)
        for h in range(heads):
            sl = slice(h * dim_head, (h + 1) * dim_head)
            inv_l = pl.reciprocal(l_scr[h], approx=approx_recip)
            q_scr[:, sl] = (acc_scr[h] * inv_l).astype(compute_dtype)
        # single full-depth out-projection matmul (instead of H depth-dh matmuls)
        attn = jnp.dot(q_scr[...], wo_ref[...],
                       preferred_element_type=jnp.float32) + bo_ref[...]
        xq = x_ref[0].astype(jnp.float32)
        # dropout1 is identity at inference
        h1 = _layernorm(xq + attn, g1_ref[...], be1_ref[...])
        h1_ref[0] = h1.astype(h1_ref.dtype)


def ffn_kernel(h1_ref, w1_ref, b1_ref, w2_ref, b2_ref, g2_ref, be2_ref,
               gf_ref, bf_ref, *rest, emit_cache, apply_final_norm, compute_dtype):
    """FFN + residual + LN2 (+ fused final norm) + fused next-layer kv compress."""
    if emit_cache:
        wdkv_ref, h2_ref, c_ref = rest
    else:
        (h2_ref,) = rest

    x1 = h1_ref[0]                                               # (rows, D) compute dtype
    f = jnp.dot(x1, w1_ref[...], preferred_element_type=jnp.float32) + b1_ref[...]
    f = _gelu_exact(f)
    f = jnp.dot(f.astype(compute_dtype), w2_ref[...],
                preferred_element_type=jnp.float32) + b2_ref[...]
    # dropout2 is identity at inference
    h2 = _layernorm(x1.astype(jnp.float32) + f, g2_ref[...], be2_ref[...])
    if apply_final_norm:                                         # fused Transformer.norm
        h2 = _layernorm(h2, gf_ref[...], bf_ref[...])
    h2_ref[0] = h2.astype(h2_ref.dtype)
    if emit_cache:                                               # next layer's latent cache
        c = jnp.dot(h2.astype(compute_dtype), wdkv_ref[...],
                    preferred_element_type=jnp.float32)
        c_ref[0] = c.astype(c_ref.dtype)


# ----------------------------------------------------------------------------
# Wrappers
# ----------------------------------------------------------------------------
def run_kv_compress(x, wdkv, *, block_rows, compute_dtype, vmem_limit):
    B, S, D = x.shape
    L = wdkv.shape[1]
    return pl.pallas_call(
        kv_compress_kernel,
        grid=(B, S // block_rows),
        in_specs=[pl.BlockSpec((1, block_rows, D), lambda b, i: (b, i, 0)),
                  pl.BlockSpec((D, L), lambda b, i: (0, 0))],
        out_specs=pl.BlockSpec((1, block_rows, L), lambda b, i: (b, i, 0)),
        out_shape=jax.ShapeDtypeStruct((B, S, L), compute_dtype),
        compiler_params=pltpu.CompilerParams(
            dimension_semantics=("parallel", "parallel"),
            vmem_limit_bytes=vmem_limit),
    )(x, wdkv)


def run_attention(x, c_kv, lp, *, heads, block_q, compute_dtype, vmem_limit):
    B, S, D = x.shape
    L = c_kv.shape[-1]
    dh = D // heads
    block_k = block_q                       # keep q/kv tiles equal (diag mask logic)
    nq = S // block_q

    # triangular (qi, ki) step tables: only causally-visible tiles exist
    q_list, k_list = [], []
    for qi in range(nq):
        for ki in range(qi + 1):
            q_list.append(qi)
            k_list.append(ki)
    n_steps = len(q_list)
    q_tbl = jnp.asarray(q_list, dtype=jnp.int32)
    k_tbl = jnp.asarray(k_list, dtype=jnp.int32)

    approx_recip = (jnp.dtype(compute_dtype) == jnp.dtype(jnp.bfloat16))
    kern = functools.partial(
        attention_kernel, heads=heads, dim_head=dh,
        block_q=block_q, block_k=block_k,
        compute_dtype=compute_dtype, approx_recip=approx_recip)

    def const(shape):
        n = len(shape)
        return pl.BlockSpec(shape, lambda b, s, qt, kt, _n=n: (0,) * _n)

    grid_spec = pltpu.PrefetchScalarGridSpec(
        num_scalar_prefetch=2,
        grid=(B, n_steps),
        in_specs=[
            pl.BlockSpec((1, block_q, D), lambda b, s, qt, kt: (b, qt[s], 0)),  # x rows
            pl.BlockSpec((1, block_k, L), lambda b, s, qt, kt: (b, kt[s], 0)),  # latent kv tile
            const((D, D)),                     # wq (pre-scaled by 1/sqrt(dh))
            const((L, D)),                     # wuk
            const((L, D)),                     # wuv
            const((D, D)),                     # wo
            const((1, D)),                     # bo
            const((1, D)), const((1, D)),      # ln1 gamma / beta
        ],
        out_specs=pl.BlockSpec((1, block_q, D), lambda b, s, qt, kt: (b, qt[s], 0)),
        scratch_shapes=[
            pltpu.VMEM((block_q, D), compute_dtype),        # q tile / normalized heads
            pltpu.VMEM((heads, block_q, 1), jnp.float32),   # running max
            pltpu.VMEM((heads, block_q, 1), jnp.float32),   # running sum
            pltpu.VMEM((heads, block_q, dh), jnp.float32),  # output accumulator
        ])

    return pl.pallas_call(
        kern,
        grid_spec=grid_spec,
        out_shape=jax.ShapeDtypeStruct((B, S, D), compute_dtype),
        compiler_params=pltpu.CompilerParams(
            dimension_semantics=("parallel", "arbitrary"),
            vmem_limit_bytes=vmem_limit),
    )(q_tbl, k_tbl, x, c_kv, lp['wq'], lp['wuk'], lp['wuv'], lp['wo'], lp['bo'],
      lp['g1'], lp['be1'])


def run_ffn(h1, lp, norm_g, norm_b, *, wdkv_next, apply_final_norm,
            block_rows, compute_dtype, vmem_limit):
    B, S, D = h1.shape
    inner = lp['w1'].shape[1]
    emit_cache = wdkv_next is not None

    kern = functools.partial(ffn_kernel, emit_cache=emit_cache,
                             apply_final_norm=apply_final_norm,
                             compute_dtype=compute_dtype)

    def const(shape):
        n = len(shape)
        return pl.BlockSpec(shape, lambda b, i, _n=n: (0,) * _n)

    in_specs = [
        pl.BlockSpec((1, block_rows, D), lambda b, i: (b, i, 0)),   # h1 rows
        const((D, inner)), const((1, inner)),                       # ffn w1 / b1
        const((inner, D)), const((1, D)),                           # ffn w2 / b2
        const((1, D)), const((1, D)),                               # ln2 gamma / beta
        const((1, D)), const((1, D)),                               # final norm gamma / beta
    ]
    args = [h1, lp['w1'], lp['b1'], lp['w2'], lp['b2'],
            lp['g2'], lp['be2'], norm_g, norm_b]
    out_shapes = [jax.ShapeDtypeStruct((B, S, D), compute_dtype)]
    out_specs = [pl.BlockSpec((1, block_rows, D), lambda b, i: (b, i, 0))]
    if emit_cache:
        L_next = wdkv_next.shape[1]
        in_specs.append(const((D, L_next)))
        args.append(wdkv_next)
        out_shapes.append(jax.ShapeDtypeStruct((B, S, L_next), compute_dtype))
        out_specs.append(pl.BlockSpec((1, block_rows, L_next), lambda b, i: (b, i, 0)))

    res = pl.pallas_call(
        kern,
        grid=(B, S // block_rows),
        in_specs=in_specs,
        out_specs=out_specs,
        out_shape=out_shapes,
        compiler_params=pltpu.CompilerParams(
            dimension_semantics=("parallel", "parallel"),
            vmem_limit_bytes=vmem_limit),
    )(*args)
    h2 = res[0]
    c_next = res[1] if emit_cache else None
    return h2, c_next


def prepare_params(params, *, heads, compute_dtype):
    """Fold the attention scale into wq and cast matmul weights to compute dtype."""
    D = params['layers'][0]['wq'].shape[0]
    scale = (D // heads) ** -0.5
    layers = []
    for lp in params['layers']:
        layers.append(dict(
            wq=(lp['wq'] * scale).astype(compute_dtype),
            wdkv=lp['wdkv'].astype(compute_dtype),
            wuk=lp['wuk'].astype(compute_dtype),
            wuv=lp['wuv'].astype(compute_dtype),
            wo=lp['wo'].astype(compute_dtype),
            bo=lp['bo'], g1=lp['g1'], be1=lp['be1'],
            w1=lp['w1'].astype(compute_dtype), b1=lp['b1'],
            w2=lp['w2'].astype(compute_dtype), b2=lp['b2'],
            g2=lp['g2'], be2=lp['be2'],
        ))
    return dict(layers=layers, norm_g=params['norm_g'], norm_b=params['norm_b'])


def transformer_forward(x, params, *, heads, compute_dtype=jnp.bfloat16, block_q=None):
    """Mirrors Transformer.forward: returns (x, new_cache_dict)."""
    B, S, D = x.shape
    assert D % heads == 0 and D % 4 == 0
    L = D // 4
    inner = D * 4
    itemsize = jnp.dtype(compute_dtype).itemsize

    vmem_limit = _vmem_limit_bytes()
    if block_q is None:
        block_q = _pick_attn_block(S, D, L, heads, itemsize, vmem_limit)
    block_f = _pick_ffn_block(S, D, inner, L, itemsize, vmem_limit)
    assert S % block_q == 0 and S % block_f == 0

    dp = prepare_params(params, heads=heads, compute_dtype=compute_dtype)
    layers = dp['layers']
    n_layers = len(layers)
    x = x.astype(compute_dtype)

    new_cache = {}
    # layer 0's latent cache from the raw input (later layers get theirs fused
    # into the previous layer's FFN kernel)
    c = run_kv_compress(x, layers[0]['wdkv'], block_rows=block_f,
                        compute_dtype=compute_dtype, vmem_limit=vmem_limit)
    new_cache['layer_0'] = c

    for i, lp in enumerate(layers):
        h1 = run_attention(x, c, lp, heads=heads, block_q=block_q,
                           compute_dtype=compute_dtype, vmem_limit=vmem_limit)
        last = (i == n_layers - 1)
        wdkv_next = None if last else layers[i + 1]['wdkv']
        x, c_next = run_ffn(h1, lp, dp['norm_g'], dp['norm_b'],
                            wdkv_next=wdkv_next, apply_final_norm=last,
                            block_rows=block_f, compute_dtype=compute_dtype,
                            vmem_limit=vmem_limit)
        if not last:
            new_cache[f'layer_{i + 1}'] = c_next
            c = c_next
    return x, new_cache


# ----------------------------------------------------------------------------
# Deterministic parameter init (synthetic; mirrors shapes of the nn.Module)
# ----------------------------------------------------------------------------
def init_params(key, num_layers, d_model, n_heads):
    L = d_model // 4            # MLA latent dim
    inner = d_model * 4         # FeedForward mult=4

    def lin(k, fan_in, shape):
        bound = 1.0 / math.sqrt(fan_in)
        return jax.random.uniform(k, shape, jnp.float32, -bound, bound)

    layers = []
    for _ in range(num_layers):
        keys = jax.random.split(key, 9)
        key = keys[0]
        layers.append(dict(
            wq=lin(keys[1], d_model, (d_model, d_model)),
            wdkv=lin(keys[2], d_model, (d_model, L)),
            wuk=lin(keys[3], L, (L, d_model)),
            wuv=lin(keys[4], L, (L, d_model)),
            wo=lin(keys[5], d_model, (d_model, d_model)),
            bo=lin(keys[6], d_model, (1, d_model)),
            g1=jnp.ones((1, d_model), jnp.float32),
            be1=jnp.zeros((1, d_model), jnp.float32),
            w1=lin(keys[7], d_model, (d_model, inner)),
            b1=jnp.zeros((1, inner), jnp.float32),
            w2=lin(keys[8], inner, (inner, d_model)),
            b2=jnp.zeros((1, d_model), jnp.float32),
            g2=jnp.ones((1, d_model), jnp.float32),
            be2=jnp.zeros((1, d_model), jnp.float32),
        ))
    return dict(layers=layers,
                norm_g=jnp.ones((1, d_model), jnp.float32),
                norm_b=jnp.zeros((1, d_model), jnp.float32))


# ----------------------------------------------------------------------------
# Pure-JAX reference (same math, no Pallas, f32/HIGHEST) for sanity checking
# ----------------------------------------------------------------------------
def ref_forward(x, params, *, heads):
    B, S, D = x.shape
    dh = D // heads
    scale = dh ** -0.5
    causal = jnp.tril(jnp.ones((S, S), bool))
    cache = {}
    for i, lp in enumerate(params['layers']):
        q = jnp.dot(x, lp['wq'], precision=HIGH)
        c_kv = jnp.dot(x, lp['wdkv'], precision=HIGH)
        cache[f'layer_{i}'] = c_kv
        k = jnp.dot(c_kv, lp['wuk'], precision=HIGH)
        v = jnp.dot(c_kv, lp['wuv'], precision=HIGH)
        qh = q.reshape(B, S, heads, dh).transpose(0, 2, 1, 3)
        kh = k.reshape(B, S, heads, dh).transpose(0, 2, 1, 3)
        vh = v.reshape(B, S, heads, dh).transpose(0, 2, 1, 3)
        s = jnp.einsum('bhqd,bhkd->bhqk', qh, kh, precision=HIGH) * scale
        s = jnp.where(causal, s, NEG_INF)
        attn = jax.nn.softmax(s, axis=-1)
        o = jnp.einsum('bhqk,bhkd->bhqd', attn, vh, precision=HIGH)
        o = o.transpose(0, 2, 1, 3).reshape(B, S, D)
        attn_out = jnp.dot(o, lp['wo'], precision=HIGH) + lp['bo']
        x = _layernorm(x + attn_out, lp['g1'], lp['be1'])
        f = _gelu_exact(jnp.dot(x, lp['w1'], precision=HIGH) + lp['b1'])
        f = jnp.dot(f, lp['w2'], precision=HIGH) + lp['b2']
        x = _layernorm(x + f, lp['g2'], lp['be2'])
    return _layernorm(x, params['norm_g'], params['norm_b']), cache


# ----------------------------------------------------------------------------
if __name__ == "__main__":
    # Small, module-consistent config: num_layers=2, d_model=32, n_heads=4
    # (the d_ff argument of the PyTorch module is unused: FeedForward uses mult=4).
    B, S, D, H = 2, 8, 32, 4
    NUM_LAYERS = 2

    key = jax.random.PRNGKey(0)
    kx, kp = jax.random.split(key)
    x = jax.random.normal(kx, (B, S, D), jnp.float32)
    params = init_params(kp, NUM_LAYERS, D, H)

    y_ref, cache_ref = ref_forward(x, params, heads=H)

    # f32 compute path: tight-ish check against the pure-JAX reference
    y32, cache32 = transformer_forward(x, params, heads=H, compute_dtype=jnp.float32)
    y32 = jax.block_until_ready(y32)
    assert y32.shape == (B, S, D)
    assert jnp.all(jnp.isfinite(y32))
    assert jnp.allclose(y32, y_ref, atol=1e-2, rtol=1e-2), \
        "f32 kernel output mismatch vs JAX reference"
    for i in range(NUM_LAYERS):
        c = jax.block_until_ready(cache32[f'layer_{i}'])
        assert c.shape == (B, S, D // 4)
        assert jnp.allclose(c.astype(jnp.float32), cache_ref[f'layer_{i}'],
                            atol=1e-2, rtol=1e-2), f"f32 cache mismatch layer_{i}"

    # bf16 compute path (production configuration): looser tolerance
    y16, cache16 = transformer_forward(x, params, heads=H, compute_dtype=jnp.bfloat16)
    y16 = jax.block_until_ready(y16)
    for c in cache16.values():
        jax.block_until_ready(c)
    assert y16.dtype == jnp.bfloat16
    assert cache16[f'layer_{NUM_LAYERS - 1}'].shape == (B, S, D // 4)
    assert jnp.all(jnp.isfinite(y16.astype(jnp.float32)))
    assert jnp.allclose(y16.astype(jnp.float32), y_ref, atol=1.2e-1, rtol=1.2e-1), \
        "bf16 kernel mismatch vs JAX reference"

    print("KERNEL_OK")
</pallas_src>

<mosaic_0001>
module attributes {stable_mosaic.version = 11 : i64} {
  func.func @kv_compress_kernel(%arg0: i32, %arg1: i32, %arg2: memref<1x8x32xf32, #tpu.memory_space<vmem>>, %arg3: memref<32x8xf32, #tpu.memory_space<vmem>>, %arg4: memref<1x8x8xf32, #tpu.memory_space<vmem>>) attributes {dimension_semantics = [#tpu.dimension_semantics<parallel>, #tpu.dimension_semantics<parallel>], iteration_bounds = array<i64: 2, 1>, scalar_prefetch = 0 : i64, scratch_operands = 0 : i64, tpu.core_type = #tpu.core_type<tc>, window_params = [{transform_indices = @transform_0, window_bounds = array<i64: 1, 8, 32>}, {pipeline_mode = #tpu.pipeline_mode<synchronous>, transform_indices = @transform_1, window_bounds = array<i64: 32, 8>}, {transform_indices = @transform_2, window_bounds = array<i64: 1, 8, 8>}]} {
    %c0 = arith.constant 0 : index
    %c0_0 = arith.constant 0 : index
    %c0_1 = arith.constant 0 : index
    %0 = vector.load %arg2[%c0, %c0_0, %c0_1] : memref<1x8x32xf32, #tpu.memory_space<vmem>>, vector<1x8x32xf32>
    %1 = vector.shape_cast %0 : vector<1x8x32xf32> to vector<8x32xf32>
    %c0_2 = arith.constant 0 : index
    %c0_3 = arith.constant 0 : index
    %2 = vector.load %arg3[%c0_2, %c0_3] : memref<32x8xf32, #tpu.memory_space<vmem>>, vector<32x8xf32>
    %cst = arith.constant dense<0.000000e+00> : vector<8x8xf32>
    %3 = tpu.matmul %1, %2, %cst {dimension_numbers = #tpu.dot_dimension_numbers<[1], [0], [0], [1], [0, 0, 1, 1], [], []>} : vector<8x32xf32>, vector<32x8xf32>, vector<8x8xf32> -> vector<8x8xf32>
    %c0_4 = arith.constant 0 : index
    %c0_5 = arith.constant 0 : index
    %c0_6 = arith.constant 0 : index
    %4 = vector.load %arg4[%c0_4, %c0_5, %c0_6] : memref<1x8x8xf32, #tpu.memory_space<vmem>>, vector<1x8x8xf32>
    %5 = vector.shape_cast %4 : vector<1x8x8xf32> to vector<8x8xf32>
    %6 = vector.shape_cast %3 : vector<8x8xf32> to vector<1x8x8xf32>
    tpu.vector_store %arg4[%c0_4, %c0_5, %c0_6], %6 {strides = array<i32>} : memref<1x8x8xf32, #tpu.memory_space<vmem>>, vector<1x8x8xf32>,
    return
  }
  func.func @transform_0(%arg0: i32, %arg1: i32) -> (i32, i32, i32) {
    %c0_i32 = arith.constant 0 : i32
    %c0_i32_0 = arith.constant 0 : i32
    return %arg0, %arg1, %c0_i32 : i32, i32, i32
  }
  func.func @transform_1(%arg0: i32, %arg1: i32) -> (i32, i32) {
    %c0_i32 = arith.constant 0 : i32
    %c0_i32_0 = arith.constant 0 : i32
    %c0_i32_1 = arith.constant 0 : i32
    return %c0_i32, %c0_i32_0 : i32, i32
  }
  func.func @transform_2(%arg0: i32, %arg1: i32) -> (i32, i32, i32) {
    %c0_i32 = arith.constant 0 : i32
    %c0_i32_0 = arith.constant 0 : i32
    return %arg0, %arg1, %c0_i32 : i32, i32, i32
  }
}

</mosaic_0001>

<llo_original>
// kernel: tpu_custom_call.1
$region0: #{tpu_custom_call.1}
  #allocation0 [shape = 'u32[]', space=smem, size = 0x4, offset = 0x4, fixed_abs, tag = 'smem constant byte address 0x4 - core index']
  #allocation1 [shape = 'u32[144,128]{1,0:T(1,128)}', space=vmem, size = 0x12000, scoped, tag = 'internal scratch']
  %s0 = inlined_call_operand.vmem [shape: f32[2,8,32], index: 0, kind: input, shape index: {}]
  %s1 = inlined_call_operand.vmem [shape: f32[32,8], index: 1, kind: input, shape index: {}]
  %s2 = inlined_call_operand.hbm [shape: f32[2,8,8], index: 2, kind: output, shape index: {}]
  %s3 = sld [smem:[#allocation0]]
  $region41: #{tpu_custom_call.1} parent=0
    _
  %s5 = ssub.s32 1, %s3
  %s6 = scalar_select 0, %s5, %s3
  $region1: #{tpu_custom_call.1} parent=0
    #allocation2 [shape = 'u8[8192]{0}', space=vmem, size = 0x2000, scoped, tag = 'output window, operand 0']
    #allocation3 [shape = 's32[2]{0}', space=sflag, size = 0x8, scoped, tag = 'scoped memory for tpu_custom_call.1']
    %7 = vsyncpa [#allocation3], 0
    %s8 = scalar_lea.sflag [#allocation3], 1
    %9 = vsyncpa %s8, 0
    loop: start=0, step=1, limit=4
    $region2: #{tpu_custom_call.1} parent=1 // loop_pre_header
      _
    $region3: #{tpu_custom_call.1} parent=1 // loop_header
      %s11 = sphi 0, %s15
      %p12 = scmp.ge.s32.totalorder %s11, 4
      %s18 = sphi 0, %s30
      %s19 = sphi 0, %s26
      %s20 = sphi 0, %s18
      %s21 = sphi 0, %s19
      %s22 = sphi 0, %s20
      %s23 = sphi 0, %s21
      %s35 = sphi 0, %s37
      %s38 = sphi 0, %s35
      %s39 = sphi 0, %s38
      %s55 = sphi 0, %s39
      %s59 = sphi 0, %s59
      %s61 = sphi 0, %s59
      %s62 = sphi 0, %s61
      %s76 = sphi 0, %s62
      %s84 = sphi 0, %s86
      %s87 = sphi 0, %s84
      %s88 = sphi 0, %s87
      %s104 = sphi 0, %s88
    $region4: #{tpu_custom_call.1} parent=1 // loop_header_branch
      %14 = sbr.rel (%p12) target = $region8
    $region5: #{tpu_custom_call.1} parent=1 // loop_body
      %s16 = ssub.s32 %s11, 1
      %s17 = ssub.s32 %s11, 2
      %s24 = sadd.s32 1, %s19
      %p25 = scmp.ge.s32.totalorder %s24, 1
      %s26 = scalar_select %p25, 0, %s24
      %s27 = sadd.s32 1, %s18
      %s28 = scalar_select %p25, %s27, %s18
      %p29 = scmp.ge.s32.totalorder %s28, 2
      %s30 = scalar_select %p29, 0, %s28
      %s31 = ssub.s32 %s18, %s30
      %s32 = ssub.s32 %s19, %s26
      %s33 = sor.u32 %s31, %s32
      %p34 = scmp.eq.s32.totalorder %s33, 0
      %s36 = sadd.s32 %s35, 1
      %s37 = scalar_select %p34, %s35, %s36
      %p40 = pneg %p34
      %p41 = scmp.eq.s32.totalorder %s11, 1
      %p42 = por %p40, %p41
      %p43 = scmp.ne.s32.totalorder %s35, %s38
      %p44 = scmp.eq.s32.totalorder %s11, 0
      %p45 = por %p43, %p44
      %p46 = scmp.ne.s32.totalorder %s35, %s38
      %p47 = scmp.eq.s32.totalorder %s16, 1
      %p48 = por %p46, %p47
      %p49 = scmp.ne.s32.totalorder %s38, %s39
      %p50 = scmp.eq.s32.totalorder %s16, 0
      %p51 = por %p49, %p50
      %p52 = scmp.ne.s32.totalorder %s38, %s39
      %p53 = scmp.eq.s32.totalorder %s17, 1
      %p54 = por %p52, %p53
      %p56 = scmp.ne.s32.totalorder %s39, %s55
      %p57 = scmp.eq.s32.totalorder %s17, 0
      %p58 = por %p56, %p57
      %s60 = sadd.s32 %s59, 1
      %p63 = scmp.eq.s32.totalorder %s11, 1
      %p64 = scmp.ne.s32.totalorder %s59, %s61
      %p65 = scmp.eq.s32.totalorder %s11, 0
      %p66 = por %p64, %p65
      %p67 = scmp.ne.s32.totalorder %s59, %s61
      %p68 = scmp.eq.s32.totalorder %s16, 1
      %p69 = por %p67, %p68
      %p70 = scmp.ne.s32.totalorder %s61, %s62
      %p71 = scmp.eq.s32.totalorder %s16, 0
      %p72 = por %p70, %p71
      %p73 = scmp.ne.s32.totalorder %s61, %s62
      %p74 = scmp.eq.s32.totalorder %s17, 1
      %p75 = por %p73, %p74
      %p77 = scmp.ne.s32.totalorder %s62, %s76
      %p78 = scmp.eq.s32.totalorder %s17, 0
      %p79 = por %p77, %p78
      %s80 = ssub.s32 %s18, %s30
      %s81 = ssub.s32 %s19, %s26
      %s82 = sor.u32 %s80, %s81
      %p83 = scmp.eq.s32.totalorder %s82, 0
      %s85 = sadd.s32 %s84, 1
      %s86 = scalar_select %p83, %s84, %s85
      %p89 = pneg %p83
      %p90 = scmp.eq.s32.totalorder %s11, 1
      %p91 = por %p89, %p90
      %p92 = scmp.ne.s32.totalorder %s84, %s87
      %p93 = scmp.eq.s32.totalorder %s11, 0
      %p94 = por %p92, %p93
      %p95 = scmp.ne.s32.totalorder %s84, %s87
      %p96 = scmp.eq.s32.totalorder %s16, 1
      %p97 = por %p95, %p96
      %p98 = scmp.ne.s32.totalorder %s87, %s88
      %p99 = scmp.eq.s32.totalorder %s16, 0
      %p100 = por %p98, %p99
      %p101 = scmp.ne.s32.totalorder %s87, %s88
      %p102 = scmp.eq.s32.totalorder %s17, 1
      %p103 = por %p101, %p102
      %p105 = scmp.ne.s32.totalorder %s88, %s104
      %p106 = scmp.eq.s32.totalorder %s17, 0
      %p107 = por %p105, %p106
      %p108 = scmp.le.s32.totalorder 1, %s11
      %p109 = scmp.lt.s32.totalorder %s11, 3
      %p110 = pnand %p108, %p109
      %p111 = pneg %p110
      // Predicated region
      $region9: #{tpu_custom_call.1} parent=5 // pred_check
        _
      $region10: #{tpu_custom_call.1} parent=5 // pred_check_branch
        %113 = sbr.rel (%p110) target = $region12
      $region11: #{tpu_custom_call.1} parent=5 // pred_region
        %s114 = ssub.s32 %s11, 1
        // Predicated region
        $region13: #{tpu_custom_call.1} parent=11 // pred_check
          %p115 = pneg %p72
        $region14: #{tpu_custom_call.1} parent=11 // pred_check_branch
          %117 = sbr.rel (%p115) target = $region16
        $region15: #{tpu_custom_call.1} parent=11 // pred_region
          _
        $region16: #{tpu_custom_call.1} parent=11 // pred_fallthru
          _
      $region12: #{tpu_custom_call.1} parent=5 // pred_fallthru
        _
      %p118 = scmp.lt.s32.totalorder %s11, 2
      // Predicated region
      $region17: #{tpu_custom_call.1} parent=5 // pred_check
        %p119 = pneg %p118
      $region18: #{tpu_custom_call.1} parent=5 // pred_check_branch
        %121 = sbr.rel (%p119) target = $region20
      $region19: #{tpu_custom_call.1} parent=5 // pred_region
        // Predicated region
        $region21: #{tpu_custom_call.1} parent=19 // pred_check
          %p122 = pneg %p45
        $region22: #{tpu_custom_call.1} parent=19 // pred_check_branch
          %124 = sbr.rel (%p122) target = $region24
        $region23: #{tpu_custom_call.1} parent=19 // pred_region
          %p125 = scmp.lt.s32.totalorder %s18, 1
          %s126 = scalar_select %p125, %s18, 1
          %p127 = scmp.lt.s32.totalorder %s19, 0
          %s128 = scalar_select %p127, %s19, 0
          %s129 = sadd.s32 %s128, %s126
          %s130 = smul.addr %s129, 8
          %s131 = scalar_lea.vmem %s0, %s130
        $region24: #{tpu_custom_call.1} parent=19 // pred_fallthru
          _
      $region20: #{tpu_custom_call.1} parent=5 // pred_fallthru
        _
      %p132 = scmp.le.s32.totalorder 1, %s11
      %p133 = scmp.lt.s32.totalorder %s11, 3
      %p134 = pnand %p132, %p133
      %p135 = pneg %p134
      // Predicated region
      $region25: #{tpu_custom_call.1} parent=5 // pred_check
        _
      $region26: #{tpu_custom_call.1} parent=5 // pred_check_branch
        %137 = sbr.rel (%p134) target = $region28
      $region27: #{tpu_custom_call.1} parent=5 // pred_region
        %s138 = ssub.s32 %s11, 1
        %p139 = scmp.lt.s32.totalorder %s20, 1
        %s140 = scalar_select %p139, %s20, 1
        %p141 = scmp.lt.s32.totalorder %s21, 0
        %s142 = scalar_select %p141, %s21, 0
        %s143 = sadd.s32 %s142, %s140
        %s144 = smul.addr %s143, 8
        %s145 = scalar_lea.vmem %s0, %s144
        %p146 = pneg %p51
        %p147 = pneg %p48
        %p148 = pneg %p72
        %p149 = pneg %p69
        %p150 = pneg %p100
        %p151 = pneg %p97
        %s152 = sand.u32 %s87, 1
        %s153 = scalar_lea.sflag [#allocation3], %s152
        %s154 = sand.u32 %s87, 1
        %s155 = smul.addr %s154, 8
        %s156 = scalar_lea.vmem [#allocation2], %s155
        %p157 = scmp.lt.s32.totalorder %s20, 1
        %s158 = scalar_select %p157, %s20, 1
        %p159 = scmp.lt.s32.totalorder %s21, 0
        %s160 = scalar_select %p159, %s21, 0
        %s161 = sadd.s32 %s160, %s158
        %s162 = smul.addr %s161, 8
        %s163 = scalar_lea.vmem %s0, %s162
        %v164 = vld [vmem:[%s163] sm:$0xff]
        %v165 = vld [vmem:[%s1] sm:$0xff]
        %v166 = vld [vmem:[%s1 + $0x8] sm:$0xff]
        %v167 = vld [vmem:[%s1 + $0x10] sm:$0xff]
        %v168 = vld [vmem:[%s1 + $0x18] sm:$0xff]
        %vm169 = vcmask 261120
        %v171 = vsel %vm169, %v164, 0
        %173 = vmatprep.subr.mxu0 0.0
        %174 = vmatpush1.msra.mxu0 0.0
        %175 = vmatprep.subr.mxu0 0.0
        %176 = vmatpush1.msra.mxu0 0.0
        %177 = vmatprep.subr.mxu0 0.0
        %178 = vmatpush1.msra.mxu0 0.0
        %179 = vmatprep.subr.mxu0 0.0
        %180 = vmatpush1.msra.mxu0 0.0
        %181 = vmatprep.subr.mxu0 0.0
        %182 = vmatpush1.msra.mxu0 0.0
        %183 = vmatprep.subr.mxu0 0.0
        %184 = vmatpush1.msra.mxu0 0.0
        %185 = vmatprep.subr.mxu0 0.0
        %186 = vmatpush1.msra.mxu0 0.0
        %187 = vmatprep.subr.mxu0 0.0
        %188 = vmatpush1.msra.mxu0 0.0
        %189 = vmatprep.subr.mxu0 0.0
        %190 = vmatpush1.msra.mxu0 0.0
        %191 = vmatprep.subr.mxu0 0.0
        %192 = vmatpush1.msra.mxu0 0.0
        %193 = vmatprep.subr.mxu0 0.0
        %194 = vmatpush1.msra.mxu0 0.0
        %195 = vmatprep.subr.mxu0 0.0
        %196 = vmatpush1.msra.mxu0 0.0
        %197 = vmatprep.subr.mxu0 0.0
        %198 = vmatpush1.msra.mxu0 %v168
        %199 = vmatprep.subr.mxu0 0.0
        %200 = vmatpush1.msra.mxu0 %v167
        %201 = vmatprep.subr.mxu0 0.0
        %202 = vmatpush1.msra.mxu0 %v166
        %203 = vmatprep.subr.mxu0 0.0
        %204 = vmatpush1.msra.mxu0 %v165
        %205 = vmatprep.subr.mxu0 0.0
        %206 = vmatpush2.msra.mxu0 0.0
        %207 = vmatprep.subr.mxu0 0.0
        %208 = vmatpush2.msra.mxu0 0.0
        %209 = vmatprep.subr.mxu0 0.0
        %210 = vmatpush2.msra.mxu0 0.0
        %211 = vmatprep.subr.mxu0 0.0
        %212 = vmatpush2.msra.mxu0 0.0
        %213 = vmatprep.subr.mxu0 0.0
        %214 = vmatpush2.msra.mxu0 0.0
        %215 = vmatprep.subr.mxu0 0.0
        %216 = vmatpush2.msra.mxu0 0.0
        %217 = vmatprep.subr.mxu0 0.0
        %218 = vmatpush2.msra.mxu0 0.0
        %219 = vmatprep.subr.mxu0 0.0
        %220 = vmatpush2.msra.mxu0 0.0
        %221 = vmatprep.subr.mxu0 0.0
        %222 = vmatpush2.msra.mxu0 0.0
        %223 = vmatprep.subr.mxu0 0.0
        %224 = vmatpush2.msra.mxu0 0.0
        %225 = vmatprep.subr.mxu0 0.0
        %226 = vmatpush2.msra.mxu0 0.0
        %227 = vmatprep.subr.mxu0 0.0
        %228 = vmatpush2.msra.mxu0 0.0
        %229 = vmatprep.subr.mxu0 0.0
        %230 = vmatpush2.msra.mxu0 0.0
        %231 = vmatprep.subr.mxu0 0.0
        %232 = vmatpush2.msra.mxu0 0.0
        %233 = vmatprep.subr.mxu0 0.0
        %234 = vmatpush2.msra.mxu0 0.0
        %235 = vmatprep.subr.mxu0 0.0
        %236 = vmatpush2.msra.mxu0 0.0
        %237 = vmatprep.mubr.f32.mxu0 0.0
        %238 = vmatmul.mubr.f32.gmra.mxu0 %v171
        %v239 = vpop.f32.mrf.mxu0
        %v240 = vadd.f32 0.0, %v239
        %v241 = vpop.f32.mrf.mxu0
        %242 = vdwg.mxu0
        %vm243 = vcmask 64512
        %244 = vst.msk [vmem:[%s156] sm:$0xff] %vm243, %v240
        %s245 = sand.u32 %s87, 1
        %s246 = scalar_lea.sflag [#allocation3], %s245
        %s247 = sand.u32 %s87, 1
        %s248 = smul.addr %s247, 8
        %s249 = scalar_lea.vmem [#allocation2], %s248
        // Predicated region
        $region29: #{tpu_custom_call.1} parent=27 // pred_check
          %p250 = pneg %p97
        $region30: #{tpu_custom_call.1} parent=27 // pred_check_branch
          %252 = sbr.rel (%p250) target = $region32
        $region31: #{tpu_custom_call.1} parent=27 // pred_region
          %s254 = ssub.s32 128, 128
          %255 = vsyncadd %s246, %s254
          %s256 = sadd.s32 %s21, %s20
          %s257 = smul.addr %s256, 128
          %s258 = scalar_lea.hbm %s2, %s257
          %s260 = sshll.u32 %s249, 4
          %s261 = int_to_ptr.vmem [resolvable:$true] %s260
          %263 = dma.vmem_to_hbm [thread:$0]  %s261, 128, %s258, %s246
        $region32: #{tpu_custom_call.1} parent=27 // pred_fallthru
          _
      $region28: #{tpu_custom_call.1} parent=5 // pred_fallthru
        _
      %p264 = scmp.le.s32.totalorder 2, %s11
      // Predicated region
      $region33: #{tpu_custom_call.1} parent=5 // pred_check
        %p265 = pneg %p264
      $region34: #{tpu_custom_call.1} parent=5 // pred_check_branch
        %267 = sbr.rel (%p265) target = $region36
      $region35: #{tpu_custom_call.1} parent=5 // pred_region
        %s268 = ssub.s32 %s11, 2
        // Predicated region
        $region37: #{tpu_custom_call.1} parent=35 // pred_check
          %p269 = pneg %p103
        $region38: #{tpu_custom_call.1} parent=35 // pred_check_branch
          %271 = sbr.rel (%p269) target = $region40
        $region39: #{tpu_custom_call.1} parent=35 // pred_region
          %s272 = sand.u32 %s88, 1
          %s273 = scalar_lea.sflag [#allocation3], %s272
          %s274 = sand.u32 %s88, 1
          %s275 = smul.addr %s274, 8
          %s276 = scalar_lea.vmem [#allocation2], %s275
          %277 = dma.done %s273, 128
        $region40: #{tpu_custom_call.1} parent=35 // pred_fallthru
          _
      $region36: #{tpu_custom_call.1} parent=5 // pred_fallthru
        _
    $region6: #{tpu_custom_call.1} parent=1 // loop_footer
      %s15 = sadd.s32 1, %s11
    $region7: #{tpu_custom_call.1} parent=1 // loop_footer_branch
      %10 = sbr.rel target = $region3
    $region8: #{tpu_custom_call.1} parent=1 // loop_exit
      _
    %278 = vsyncpa [#allocation3], 1
    %s279 = scalar_lea.sflag [#allocation3], 1
    %280 = vsyncpa %s279, 1

</llo_original>
